<compile_context>
chip_gen: v7x
topology: tpu7x:2x2x1
jax: 0.10.0
libtpu: 0.0.40
codegen_flags: <defaults>
</compile_context>

<pallas_src>
import functools

import jax
import jax.numpy as jnp
from jax.experimental import pallas as pl
from jax.experimental.pallas import tpu as pltpu

LANES = 128
_MiB = 1024 * 1024
# Inputs smaller than this skip the Pallas kernel: launch + reshape plumbing
# dominates there and plain XLA fusion is strictly faster.
_SMALL_BYTES_DEFAULT = 512 * 1024
# Cap per-block bytes; streaming is already on the HBM-roofline plateau by a
# few MiB, and smaller blocks keep more grid steps for megacore sharding.
_MAX_BLOCK_BYTES = 8 * _MiB


def _sublane_pack(dtype) -> int:
    """Minimum sublane multiple for dtype: 8 (f32), 16 (bf16/f16), 32 (int8/fp8)."""
    itemsize = jnp.dtype(dtype).itemsize
    return 8 * max(1, 4 // itemsize)


@functools.lru_cache(maxsize=1)
def _hw_info():
    """Returns (vmem_capacity_bytes, is_v5e) with conservative fallbacks."""
    kind = ""
    try:
        kind = jax.devices()[0].device_kind.lower()
    except Exception:
        pass
    vmem_cap = None
    try:
        vmem_cap = int(pltpu.get_tpu_info().vmem_capacity_bytes)
    except Exception:
        vmem_cap = None
    if not vmem_cap or vmem_cap <= 0:
        # v7x has 64 MiB per TensorCore; v5e/v6e have 128 MiB.
        vmem_cap = 64 * _MiB if "v7" in kind else 128 * _MiB
    is_v5e = ("v5e" in kind) or ("v5 lite" in kind) or ("v5lite" in kind)
    return vmem_cap, is_v5e


class Lambda:
    """JAX/Pallas analogue of the PyTorch Lambda module.

    :param func: the wrapped function. For a single-array elementwise call it
                 is traced inside a Pallas TPU kernel; otherwise it is called
                 directly (pass-through semantics preserved).
    :param compute_dtype: "auto" (default) upcasts sub-32-bit float inputs to
                 f32 only on v5e (no bf16 VPU/EUP there); None never upcasts;
                 an explicit dtype always upcasts. Output dtype always matches
                 what func(x) natively returns.
    :param min_kernel_bytes: tensors smaller than this bypass the kernel.
    """

    def __init__(self, func, compute_dtype="auto", min_kernel_bytes=_SMALL_BYTES_DEFAULT):
        self.func = func
        self.compute_dtype = compute_dtype
        self.min_kernel_bytes = min_kernel_bytes

    def __call__(self, *args, **kwargs):
        if (len(args) == 1 and not kwargs
                and hasattr(args[0], "shape") and hasattr(args[0], "dtype")):
            return _apply_elementwise_pallas(
                self.func, args[0],
                compute_dtype=self.compute_dtype,
                min_kernel_bytes=self.min_kernel_bytes)
        # TODO(synk): multi-arg / kwargs / non-elementwise wrapped funcs are not
        # expressible as one generic Pallas tiling; call func directly.
        return self.func(*args, **kwargs)


def _apply_elementwise_pallas(func, x, compute_dtype="auto",
                              min_kernel_bytes=_SMALL_BYTES_DEFAULT):
    orig_shape = x.shape
    orig_dtype = x.dtype
    total = 1
    for d in orig_shape:
        total *= d
    itemsize = jnp.dtype(orig_dtype).itemsize

    # Small-tensor fast path: plain XLA is faster than a pallas_call launch.
    if total == 0 or total < LANES or total * itemsize < min_kernel_bytes:
        return func(x)

    vmem_cap, is_v5e = _hw_info()

    # In-kernel compute precision: only v5e lacks a bf16 VPU/EUP datapath.
    if compute_dtype == "auto":
        kernel_compute_dtype = (
            jnp.float32
            if (is_v5e and jnp.issubdtype(orig_dtype, jnp.floating) and itemsize < 4)
            else None
        )
    else:
        kernel_compute_dtype = compute_dtype

    pack = _sublane_pack(orig_dtype)

    # Output dtype exactly as torch's Lambda would produce (func on x's dtype).
    out_dtype = jax.eval_shape(
        func, jax.ShapeDtypeStruct((pack, LANES), orig_dtype)).dtype
    out_itemsize = jnp.dtype(out_dtype).itemsize

    x_flat = jnp.ravel(x)
    # 128-aligned prefix runs through the kernel; the <128-element tail (ragged
    # shapes only) is computed with plain jnp and stitched back. No full
    # padded-input / sliced-output copies.
    rows = total // LANES
    main = rows * LANES
    tail = total - main
    x2d = (x_flat if tail == 0 else x_flat[:main]).reshape(rows, LANES)

    # Per-block byte budget from this chip's VMEM capacity:
    # v7x (64 MiB) -> 8 MiB blocks; v5e/v6e (128 MiB) -> capped at 8 MiB.
    # in+out, double-buffered => ~32 MiB working set.
    block_bytes = min(vmem_cap // 8, _MAX_BLOCK_BYTES)
    per_row_bytes = LANES * max(itemsize, out_itemsize)
    budget_rows = max(pack, (block_bytes // per_row_bytes) // pack * pack)

    if rows > budget_rows:
        tile_rows = budget_rows
    else:
        # Never collapse to a single grid step: >=2 steps lets
        # dimension_semantics=("parallel",) shard across v7x's 2 TensorCores
        # and gives the DMA pipeline something to overlap.
        half = (rows + 1) // 2
        tile_rows = min(rows, ((half + pack - 1) // pack) * pack)
    grid = (pl.cdiv(rows, tile_rows),)  # partial last block is masked by Pallas

    def kernel(x_ref, o_ref):
        v = x_ref[...]
        if kernel_compute_dtype is not None and v.dtype != kernel_compute_dtype:
            v = v.astype(kernel_compute_dtype)
        o_ref[...] = func(v).astype(o_ref.dtype)

    # Advisory cost for XLA scheduling, derived from the wrapped func itself.
    try:
        cost = pl.estimate_cost(
            func, jax.ShapeDtypeStruct((rows, LANES), orig_dtype))
    except Exception:
        cost = None

    out2d = pl.pallas_call(
        kernel,
        out_shape=jax.ShapeDtypeStruct((rows, LANES), out_dtype),
        grid_spec=pltpu.PrefetchScalarGridSpec(
            num_scalar_prefetch=0,
            grid=grid,
            in_specs=[pl.BlockSpec((tile_rows, LANES), lambda i: (i, 0))],
            out_specs=pl.BlockSpec((tile_rows, LANES), lambda i: (i, 0)),
        ),
        compiler_params=pltpu.CompilerParams(
            dimension_semantics=("parallel",),
            # Explicit scoped-VMEM limit: never rely on the 16 MiB (v5e) /
            # 32 MiB (v6e/v7x) defaults; leave headroom under physical VMEM.
            vmem_limit_bytes=int(vmem_cap * 3 // 4),
        ),
        cost_estimate=cost,
    )(x2d)

    out_main = out2d.reshape(main)
    if tail:
        out_tail = func(x_flat[main:]).astype(out_dtype)
        out_flat = jnp.concatenate([out_main, out_tail])
    else:
        out_flat = out_main
    return out_flat.reshape(orig_shape)


if __name__ == "__main__":
    key = jax.random.PRNGKey(0)
    silu = lambda t: t * jax.nn.sigmoid(t)   # example func wrapped by Lambda

    # 1) Small NCHW input consistent with typical conv-style Lambda usage.
    #    (Default path: small-tensor bypass -> plain XLA.)
    x = jax.random.normal(key, (2, 4, 16, 16), dtype=jnp.float32)
    out = jax.block_until_ready(Lambda(silu)(x))
    assert out.shape == x.shape and out.dtype == x.dtype
    assert jnp.max(jnp.abs(out - silu(x))) < 1e-5

    # 2) Same small input forced through the Pallas kernel path.
    out_k = jax.block_until_ready(Lambda(silu, min_kernel_bytes=0)(x))
    assert out_k.shape == x.shape and out_k.dtype == x.dtype
    assert jnp.max(jnp.abs(out_k - silu(x))) < 1e-5

    # 3) A modest 1 MiB input that takes the kernel path by default
    #    (lane-dense blocks, >=2 grid steps).
    x_big = jax.random.normal(key, (4, 4, 128, 128), dtype=jnp.float32)
    out_big = jax.block_until_ready(Lambda(silu)(x_big))
    assert jnp.max(jnp.abs(out_big - silu(x_big))) < 1e-5

    # 4) Ragged flat size (not a multiple of 128): kernel prefix + jnp tail.
    x_rag = jax.random.normal(key, (3, 5, 67), dtype=jnp.float32)
    out_rag = jax.block_until_ready(Lambda(silu, min_kernel_bytes=0)(x_rag))
    assert out_rag.shape == x_rag.shape
    assert jnp.max(jnp.abs(out_rag - silu(x_rag))) < 1e-5

    # 5) bf16 input: native bf16 compute on v6e/v7x, auto f32 upcast on v5e.
    x_bf = jax.random.normal(key, (2, 4, 16, 16), dtype=jnp.bfloat16)
    out_bf = jax.block_until_ready(Lambda(silu, min_kernel_bytes=0)(x_bf))
    assert out_bf.shape == x_bf.shape and out_bf.dtype == x_bf.dtype
    assert jnp.max(jnp.abs(out_bf.astype(jnp.float32)
                           - silu(x_bf).astype(jnp.float32))) < 5e-2

    print("KERNEL_OK")
</pallas_src>

<mosaic_0001>
module attributes {stable_mosaic.version = 11 : i64} {
  func.func @kernel(%arg0: i32, %arg1: memref<8x128xf32, #tpu.memory_space<vmem>>, %arg2: memref<8x128xf32, #tpu.memory_space<vmem>>) attributes {dimension_semantics = [#tpu.dimension_semantics<parallel>], iteration_bounds = array<i64: 2>, scalar_prefetch = 0 : i64, scratch_operands = 0 : i64, tpu.core_type = #tpu.core_type<tc>, window_params = [{transform_indices = @transform_0, window_bounds = array<i64: 8, 128>}, {transform_indices = @transform_1, window_bounds = array<i64: 8, 128>}]} {
    %c0 = arith.constant 0 : index
    %c0_0 = arith.constant 0 : index
    %0 = vector.load %arg1[%c0, %c0_0] : memref<8x128xf32, #tpu.memory_space<vmem>>, vector<8x128xf32>
    %1 = arith.negf %0 : vector<8x128xf32>
    %2 = math.exp %1 : vector<8x128xf32>
    %cst = arith.constant 1.000000e+00 : f32
    %3 = vector.broadcast %cst : f32 to vector<8x128xf32>
    %4 = arith.addf %3, %2 : vector<8x128xf32>
    %5 = arith.divf %3, %4 : vector<8x128xf32>
    %6 = arith.mulf %0, %5 : vector<8x128xf32>
    %c0_1 = arith.constant 0 : index
    %c0_2 = arith.constant 0 : index
    %7 = vector.load %arg2[%c0_1, %c0_2] : memref<8x128xf32, #tpu.memory_space<vmem>>, vector<8x128xf32>
    tpu.vector_store %arg2[%c0_1, %c0_2], %6 {strides = array<i32>} : memref<8x128xf32, #tpu.memory_space<vmem>>, vector<8x128xf32>,
    return
  }
  func.func @transform_0(%arg0: i32) -> (i32, i32) {
    %c0_i32 = arith.constant 0 : i32
    %c0_i32_0 = arith.constant 0 : i32
    return %arg0, %c0_i32 : i32, i32
  }
  func.func @transform_1(%arg0: i32) -> (i32, i32) {
    %c0_i32 = arith.constant 0 : i32
    %c0_i32_0 = arith.constant 0 : i32
    return %arg0, %c0_i32 : i32, i32
  }
}

</mosaic_0001>

<llo_original>
// kernel: tpu_custom_call.1
$region0: #{tpu_custom_call.1}
  #allocation0 [shape = 'u32[]', space=smem, size = 0x4, offset = 0x4, fixed_abs, tag = 'smem constant byte address 0x4 - core index']
  #allocation1 [shape = 'u32[144,128]{1,0:T(1,128)}', space=vmem, size = 0x12000, scoped, tag = 'internal scratch']
  %s0 = inlined_call_operand.hbm [shape: f32[16,128], index: 0, kind: input, shape index: {}]
  %s1 = inlined_call_operand.hbm [shape: f32[16,128], index: 1, kind: output, shape index: {}]
  %s2 = sld [smem:[#allocation0]]
  $region41: #{tpu_custom_call.1} parent=0
    _
  %s4 = ssub.s32 1, %s2
  %s5 = scalar_select 0, %s4, %s2
  $region1: #{tpu_custom_call.1} parent=0
    #allocation2 [shape = 'u8[8192]{0}', space=vmem, size = 0x2000, scoped, tag = 'input window, operand 0']
    #allocation3 [shape = 's32[2]{0}', space=sflag, size = 0x8, scoped, tag = 'scoped memory for tpu_custom_call.1']
    #allocation4 [shape = 's32[2]{0}', space=sflag, size = 0x8, scoped, tag = 'scoped memory for tpu_custom_call.1']
    #allocation5 [shape = 'u8[8192]{0}', space=vmem, size = 0x2000, scoped, tag = 'output window, operand 0']
    %6 = vsyncpa [#allocation3], 0
    %s7 = scalar_lea.sflag [#allocation3], 1
    %8 = vsyncpa %s7, 0
    %9 = vsyncpa [#allocation4], 0
    %s10 = scalar_lea.sflag [#allocation4], 1
    %11 = vsyncpa %s10, 0
    loop: start=0, step=1, limit=4
    $region2: #{tpu_custom_call.1} parent=1 // loop_pre_header
      _
    $region3: #{tpu_custom_call.1} parent=1 // loop_header
      %s13 = sphi 0, %s17
      %p14 = scmp.ge.s32.totalorder %s13, 4
      %s23 = sphi 0, %s25
      %s26 = sphi 0, %s23
      %s27 = sphi 0, %s26
      %s43 = sphi 0, %s27
      %s49 = sphi 0, %s51
      %s52 = sphi 0, %s49
      %s53 = sphi 0, %s52
      %s69 = sphi 0, %s53
    $region4: #{tpu_custom_call.1} parent=1 // loop_header_branch
      %16 = sbr.rel (%p14) target = $region8
    $region5: #{tpu_custom_call.1} parent=1 // loop_body
      %s18 = ssub.s32 %s13, 1
      %s19 = ssub.s32 %s13, 2
      %s20 = sadd.s32 %s13, 1
      %s21 = ssub.s32 %s13, %s20
      %p22 = scmp.eq.s32.totalorder %s21, 0
      %s24 = sadd.s32 %s23, 1
      %s25 = scalar_select %p22, %s23, %s24
      %p28 = pneg %p22
      %p29 = scmp.eq.s32.totalorder %s13, 1
      %p30 = por %p28, %p29
      %p31 = scmp.ne.s32.totalorder %s23, %s26
      %p32 = scmp.eq.s32.totalorder %s13, 0
      %p33 = por %p31, %p32
      %p34 = scmp.ne.s32.totalorder %s23, %s26
      %p35 = scmp.eq.s32.totalorder %s18, 1
      %p36 = por %p34, %p35
      %p37 = scmp.ne.s32.totalorder %s26, %s27
      %p38 = scmp.eq.s32.totalorder %s18, 0
      %p39 = por %p37, %p38
      %p40 = scmp.ne.s32.totalorder %s26, %s27
      %p41 = scmp.eq.s32.totalorder %s19, 1
      %p42 = por %p40, %p41
      %p44 = scmp.ne.s32.totalorder %s27, %s43
      %p45 = scmp.eq.s32.totalorder %s19, 0
      %p46 = por %p44, %p45
      %s47 = ssub.s32 %s13, %s20
      %p48 = scmp.eq.s32.totalorder %s47, 0
      %s50 = sadd.s32 %s49, 1
      %s51 = scalar_select %p48, %s49, %s50
      %p54 = pneg %p48
      %p55 = scmp.eq.s32.totalorder %s13, 1
      %p56 = por %p54, %p55
      %p57 = scmp.ne.s32.totalorder %s49, %s52
      %p58 = scmp.eq.s32.totalorder %s13, 0
      %p59 = por %p57, %p58
      %p60 = scmp.ne.s32.totalorder %s49, %s52
      %p61 = scmp.eq.s32.totalorder %s18, 1
      %p62 = por %p60, %p61
      %p63 = scmp.ne.s32.totalorder %s52, %s53
      %p64 = scmp.eq.s32.totalorder %s18, 0
      %p65 = por %p63, %p64
      %p66 = scmp.ne.s32.totalorder %s52, %s53
      %p67 = scmp.eq.s32.totalorder %s19, 1
      %p68 = por %p66, %p67
      %p70 = scmp.ne.s32.totalorder %s53, %s69
      %p71 = scmp.eq.s32.totalorder %s19, 0
      %p72 = por %p70, %p71
      %p73 = scmp.le.s32.totalorder 1, %s13
      %p74 = scmp.lt.s32.totalorder %s13, 3
      %p75 = pnand %p73, %p74
      %p76 = pneg %p75
      // Predicated region
      $region9: #{tpu_custom_call.1} parent=5 // pred_check
        _
      $region10: #{tpu_custom_call.1} parent=5 // pred_check_branch
        %78 = sbr.rel (%p75) target = $region12
      $region11: #{tpu_custom_call.1} parent=5 // pred_region
        %s79 = ssub.s32 %s13, 1
      $region12: #{tpu_custom_call.1} parent=5 // pred_fallthru
        _
      %p80 = scmp.lt.s32.totalorder %s13, 2
      // Predicated region
      $region13: #{tpu_custom_call.1} parent=5 // pred_check
        %p81 = pneg %p80
      $region14: #{tpu_custom_call.1} parent=5 // pred_check_branch
        %83 = sbr.rel (%p81) target = $region16
      $region15: #{tpu_custom_call.1} parent=5 // pred_region
        // Predicated region
        $region17: #{tpu_custom_call.1} parent=15 // pred_check
          %p84 = pneg %p33
        $region18: #{tpu_custom_call.1} parent=15 // pred_check_branch
          %86 = sbr.rel (%p84) target = $region20
        $region19: #{tpu_custom_call.1} parent=15 // pred_region
          %s87 = sand.u32 %s23, 1
          %s88 = scalar_lea.sflag [#allocation3], %s87
          %s89 = sand.u32 %s23, 1
          %s90 = smul.addr %s89, 8
          %s91 = scalar_lea.vmem [#allocation2], %s90
          %s93 = ssub.s32 128, 128
          %94 = vsyncadd %s88, %s93
          %s95 = smul.addr %s13, 128
          %s96 = scalar_lea.hbm %s0, %s95
          %s98 = sshll.u32 %s91, 4
          %s99 = int_to_ptr.vmem [resolvable:$true] %s98
          %101 = dma.hbm_to_vmem [thread:$0]  %s96, 128, %s99, %s88
        $region20: #{tpu_custom_call.1} parent=15 // pred_fallthru
          _
      $region16: #{tpu_custom_call.1} parent=5 // pred_fallthru
        _
      %p102 = scmp.le.s32.totalorder 1, %s13
      %p103 = scmp.lt.s32.totalorder %s13, 3
      %p104 = pnand %p102, %p103
      %p105 = pneg %p104
      // Predicated region
      $region21: #{tpu_custom_call.1} parent=5 // pred_check
        _
      $region22: #{tpu_custom_call.1} parent=5 // pred_check_branch
        %107 = sbr.rel (%p104) target = $region24
      $region23: #{tpu_custom_call.1} parent=5 // pred_region
        %s108 = ssub.s32 %s13, 1
        %s109 = sand.u32 %s26, 1
        %s110 = scalar_lea.sflag [#allocation3], %s109
        %s111 = sand.u32 %s26, 1
        %s112 = smul.addr %s111, 8
        %s113 = scalar_lea.vmem [#allocation2], %s112
        // Predicated region
        $region25: #{tpu_custom_call.1} parent=23 // pred_check
          %p114 = pneg %p39
        $region26: #{tpu_custom_call.1} parent=23 // pred_check_branch
          %116 = sbr.rel (%p114) target = $region28
        $region27: #{tpu_custom_call.1} parent=23 // pred_region
          %117 = dma.done %s110, 128
        $region28: #{tpu_custom_call.1} parent=23 // pred_fallthru
          _
        %s118 = sand.u32 %s26, 1
        %s119 = scalar_lea.sflag [#allocation3], %s118
        %s120 = sand.u32 %s26, 1
        %s121 = smul.addr %s120, 8
        %s122 = scalar_lea.vmem [#allocation2], %s121
        %p123 = pneg %p39
        %p124 = pneg %p36
        %p125 = pneg %p65
        %p126 = pneg %p62
        %s127 = sand.u32 %s52, 1
        %s128 = scalar_lea.sflag [#allocation4], %s127
        %s129 = sand.u32 %s52, 1
        %s130 = smul.addr %s129, 8
        %s131 = scalar_lea.vmem [#allocation5], %s130
        %v132 = vld [vmem:[%s113] sm:$0xff]
        %v133 = vxor.u32 %v132, 2147483648
        %v134 = vmul.f32 %v133, 1.442695
        %v135 = vpow.pop %v134
        %v136 = vadd.f32 %v135, 1.0
        %v137 = vrcp.pop %v136
        %v138 = vmul.f32 1.0, %v137
        %v139 = vmul.f32 %v132, %v138
        %140 = vst [vmem:[%s131] sm:$0xff] %v139
        %s141 = sand.u32 %s52, 1
        %s142 = scalar_lea.sflag [#allocation4], %s141
        %s143 = sand.u32 %s52, 1
        %s144 = smul.addr %s143, 8
        %s145 = scalar_lea.vmem [#allocation5], %s144
        // Predicated region
        $region29: #{tpu_custom_call.1} parent=23 // pred_check
          %p146 = pneg %p62
        $region30: #{tpu_custom_call.1} parent=23 // pred_check_branch
          %148 = sbr.rel (%p146) target = $region32
        $region31: #{tpu_custom_call.1} parent=23 // pred_region
          %s150 = ssub.s32 128, 128
          %151 = vsyncadd %s142, %s150
          %s152 = smul.addr %s18, 128
          %s153 = scalar_lea.hbm %s1, %s152
          %s155 = sshll.u32 %s145, 4
          %s156 = int_to_ptr.vmem [resolvable:$true] %s155
          %158 = dma.vmem_to_hbm [thread:$0]  %s156, 128, %s153, %s142
        $region32: #{tpu_custom_call.1} parent=23 // pred_fallthru
          _
      $region24: #{tpu_custom_call.1} parent=5 // pred_fallthru
        _
      %p159 = scmp.le.s32.totalorder 2, %s13
      // Predicated region
      $region33: #{tpu_custom_call.1} parent=5 // pred_check
        %p160 = pneg %p159
      $region34: #{tpu_custom_call.1} parent=5 // pred_check_branch
        %162 = sbr.rel (%p160) target = $region36
      $region35: #{tpu_custom_call.1} parent=5 // pred_region
        %s163 = ssub.s32 %s13, 2
        // Predicated region
        $region37: #{tpu_custom_call.1} parent=35 // pred_check
          %p164 = pneg %p68
        $region38: #{tpu_custom_call.1} parent=35 // pred_check_branch
          %166 = sbr.rel (%p164) target = $region40
        $region39: #{tpu_custom_call.1} parent=35 // pred_region
          %s167 = sand.u32 %s53, 1
          %s168 = scalar_lea.sflag [#allocation4], %s167
          %s169 = sand.u32 %s53, 1
          %s170 = smul.addr %s169, 8
          %s171 = scalar_lea.vmem [#allocation5], %s170
          %172 = dma.done %s168, 128
        $region40: #{tpu_custom_call.1} parent=35 // pred_fallthru
          _
      $region36: #{tpu_custom_call.1} parent=5 // pred_fallthru
        _
    $region6: #{tpu_custom_call.1} parent=1 // loop_footer
      %s17 = sadd.s32 1, %s13
    $region7: #{tpu_custom_call.1} parent=1 // loop_footer_branch
      %12 = sbr.rel target = $region3
    $region8: #{tpu_custom_call.1} parent=1 // loop_exit
      _
    %173 = vsyncpa [#allocation3], 1
    %s174 = scalar_lea.sflag [#allocation3], 1
    %175 = vsyncpa %s174, 1
    %176 = vsyncpa [#allocation4], 1
    %s177 = scalar_lea.sflag [#allocation4], 1
    %178 = vsyncpa %s177, 1

</llo_original>
